<compile_context>
chip_gen: v7x
topology: tpu7x:2x2x1
jax: 0.10.0
libtpu: 0.0.40
codegen_flags: <defaults>
</compile_context>

<pallas_src>
import functools

import jax
import jax.numpy as jnp
from jax import lax
from jax.experimental import pallas as pl
from jax.experimental.pallas import tpu as pltpu


def _round_up(v, m):
    return ((v + m - 1) // m) * m


def _kd_loss_kernel(x_ref, t_ref, o_ref, *, inv_temp, n_rows, tile_rows, mask_rows):
    # (tile_rows, C) tile: upcast to f32 in-kernel (HBM traffic stays at the
    # input dtype width) and apply 1/T as a plain VPU multiply.
    x = x_ref[...].astype(jnp.float32) * inv_temp
    t = t_ref[...].astype(jnp.float32)

    if mask_rows:
        # The last block may extend past the (unpadded) batch extent; its
        # out-of-bounds rows hold unspecified data, so neutralize them.
        row = lax.broadcasted_iota(jnp.int32, x.shape, 0) + pl.program_id(0) * tile_rows
        valid = row < n_rows
        x = jnp.where(valid, x, 0.0)
        t = jnp.where(valid, t, 0.0)

    # Numerically-stable log-sum-exp along the class (lane) axis.
    m = jnp.max(x, axis=1, keepdims=True)
    z = x - m
    lse = jnp.log(jnp.sum(jnp.exp(z), axis=1, keepdims=True))

    # KLDivLoss pointwise term t*(log t - log_p) with t<=0 entries contributing
    # exactly 0.  Using log_p = z - lse the per-row sum factorizes, so no
    # log_p / pointwise slabs are materialized:
    #   sum_c t*(log t - log_p) = sum_c t*log t - sum_c t*z + lse * sum_c t
    tm = jnp.where(t > 0, t, 0.0)
    t_logt = jnp.where(t > 0, t * jnp.log(jnp.where(t > 0, t, 1.0)), 0.0)

    o_ref[...] = (
        jnp.sum(t_logt, axis=1, keepdims=True)
        - jnp.sum(tm * z, axis=1, keepdims=True)
        + lse * jnp.sum(tm, axis=1, keepdims=True)
    )


def kd_loss(logits, target, temp_factor, *, min_blocks=4):
    """logits, target: (N, C) arrays (f32 or bf16). Returns scalar f32 loss."""
    n, c = logits.shape
    temp_factor = float(temp_factor)

    # ---- generation-aware VMEM budget ---------------------------------------
    try:
        vmem_cap = int(pltpu.get_tpu_info().vmem_capacity_bytes)
    except Exception:
        vmem_cap = 64 * 1024 * 1024  # conservative fallback (v7x per-TC VMEM)
    # 96 MiB scoped on v5e/v6e (128 MiB physical), 48 MiB on v7x (64 MiB).
    vmem_limit = min((vmem_cap * 3) // 4, 96 * 1024 * 1024)
    usable = (vmem_limit * 3) // 4  # headroom for compiler-internal scratch

    # ---- row tile ------------------------------------------------------------
    # 16-bit inputs pack 2 rows per sublane -> tile rows must be a multiple of
    # 16 to keep loads packed/unmasked; f32 needs a multiple of 8.
    sub = 16 if min(logits.dtype.itemsize, target.dtype.itemsize) < 4 else 8
    # Per tile row: 2 double-buffered input slabs (native dtype) plus ~4 live
    # f32 temporaries of the same footprint inside the kernel body.
    per_row_bytes = c * (2 * logits.dtype.itemsize + 2 * target.dtype.itemsize + 4 * 4)
    tn = max(sub, usable // per_row_bytes)
    # Keep >= min_blocks grid steps when N permits: pipelining needs >= 2 steps
    # and the single "parallel" axis is what shards across v7x's 2 TensorCores.
    tn = min(tn, _round_up(pl.cdiv(n, min_blocks), sub))
    tn = min(tn, _round_up(n, sub))
    tn = max(sub, (tn // sub) * sub)

    num_blocks = pl.cdiv(n, tn)
    mask_rows = (n % tn) != 0  # only the last block can be partial

    kernel = functools.partial(
        _kd_loss_kernel,
        inv_temp=1.0 / temp_factor,
        n_rows=n,
        tile_rows=tn,
        mask_rows=mask_rows,
    )

    elem = n * c
    cost = pl.CostEstimate(
        flops=10 * elem,
        transcendentals=2 * elem,
        bytes_accessed=elem * (logits.dtype.itemsize + target.dtype.itemsize)
        + num_blocks * tn * 4,
    )

    row_partials = pl.pallas_call(
        kernel,
        grid=(num_blocks,),
        in_specs=[
            pl.BlockSpec((tn, c), lambda i: (i, 0)),  # full class extent per block
            pl.BlockSpec((tn, c), lambda i: (i, 0)),
        ],
        out_specs=pl.BlockSpec((tn, 1), lambda i: (i, 0)),
        out_shape=jax.ShapeDtypeStruct((num_blocks * tn, 1), jnp.float32),
        compiler_params=pltpu.CompilerParams(
            dimension_semantics=("parallel",),
            vmem_limit_bytes=vmem_limit,
        ),
        cost_estimate=cost,
    )(logits, target)

    # Tiny final cross-block reduction + the T^2 / N scaling in plain JAX.
    return jnp.sum(row_partials) * (temp_factor * temp_factor) / float(n)


def _reference(logits, target, temp_factor):
    log_p = jax.nn.log_softmax(logits.astype(jnp.float32) / temp_factor, axis=1)
    t = target.astype(jnp.float32)
    pointwise = jnp.where(
        t > 0, t * (jnp.log(jnp.where(t > 0, t, 1.0)) - log_p), 0.0
    )
    return jnp.sum(pointwise) * temp_factor ** 2 / logits.shape[0]


if __name__ == "__main__":
    key = jax.random.PRNGKey(0)
    temp = 4.0
    k1, k2, k3, k4, k5, k6 = jax.random.split(key, 6)

    # Case 1: aligned-ish shapes (batch=8, classes=32), f32.
    logits = jax.random.normal(k1, (8, 32), dtype=jnp.float32)
    target = jax.nn.softmax(jax.random.normal(k2, (8, 32), dtype=jnp.float32), axis=1)
    loss = kd_loss(logits, target, temp)
    jax.block_until_ready(loss)
    loss_ref = _reference(logits, target, temp)
    assert jnp.allclose(loss, loss_ref, rtol=1e-5, atol=1e-5), (loss, loss_ref)

    # Case 2: ragged shapes exercising the in-kernel row mask and a non-128
    # lane width (batch=10, classes=33), f32 — no HBM padding copies.
    logits2 = jax.random.normal(k3, (10, 33), dtype=jnp.float32)
    target2 = jax.nn.softmax(jax.random.normal(k4, (10, 33), dtype=jnp.float32), axis=1)
    loss2 = kd_loss(logits2, target2, temp)
    jax.block_until_ready(loss2)
    loss2_ref = _reference(logits2, target2, temp)
    assert jnp.allclose(loss2, loss2_ref, rtol=1e-5, atol=1e-5), (loss2, loss2_ref)

    # Case 3: bf16 inputs (upcast happens inside the kernel; 16-row tiles),
    # batch=24, classes=40.
    logits3 = jax.random.normal(k5, (24, 40), dtype=jnp.bfloat16)
    target3 = jax.nn.softmax(
        jax.random.normal(k6, (24, 40), dtype=jnp.float32), axis=1
    ).astype(jnp.bfloat16)
    loss3 = kd_loss(logits3, target3, temp)
    jax.block_until_ready(loss3)
    loss3_ref = _reference(logits3, target3, temp)
    assert jnp.allclose(loss3, loss3_ref, rtol=2e-3, atol=2e-3), (loss3, loss3_ref)

    print("KERNEL_OK")
</pallas_src>

<mosaic_0001>
module attributes {stable_mosaic.version = 11 : i64} {
  func.func @_kd_loss_kernel(%arg0: i32, %arg1: memref<8x32xf32, #tpu.memory_space<vmem>>, %arg2: memref<8x32xf32, #tpu.memory_space<vmem>>, %arg3: memref<8x1xf32, #tpu.memory_space<vmem>>) attributes {dimension_semantics = [#tpu.dimension_semantics<parallel>], iteration_bounds = array<i64: 1>, scalar_prefetch = 0 : i64, scratch_operands = 0 : i64, tpu.core_type = #tpu.core_type<tc>, window_params = [{transform_indices = @transform_0, window_bounds = array<i64: 8, 32>}, {transform_indices = @transform_1, window_bounds = array<i64: 8, 32>}, {transform_indices = @transform_2, window_bounds = array<i64: 8, 1>}]} {
    %c0 = arith.constant 0 : index
    %c0_0 = arith.constant 0 : index
    %0 = vector.load %arg1[%c0, %c0_0] : memref<8x32xf32, #tpu.memory_space<vmem>>, vector<8x32xf32>
    %cst = arith.constant 2.500000e-01 : f32
    %1 = vector.broadcast %cst : f32 to vector<8x32xf32>
    %2 = arith.mulf %0, %1 : vector<8x32xf32>
    %c0_1 = arith.constant 0 : index
    %c0_2 = arith.constant 0 : index
    %3 = vector.load %arg2[%c0_1, %c0_2] : memref<8x32xf32, #tpu.memory_space<vmem>>, vector<8x32xf32>
    %cst_3 = arith.constant dense<0xFF800000> : vector<8xf32>
    %4 = vector.multi_reduction <maximumf>, %2, %cst_3 [1] : vector<8x32xf32> to vector<8xf32>
    %5 = vector.shape_cast %4 : vector<8xf32> to vector<8x1xf32>
    %6 = vector.broadcast %5 : vector<8x1xf32> to vector<8x32xf32>
    %7 = arith.subf %2, %6 : vector<8x32xf32>
    %8 = math.exp %7 : vector<8x32xf32>
    %cst_4 = arith.constant dense<0.000000e+00> : vector<8xf32>
    %9 = vector.multi_reduction <add>, %8, %cst_4 [1] : vector<8x32xf32> to vector<8xf32>
    %10 = vector.shape_cast %9 : vector<8xf32> to vector<8x1xf32>
    %11 = math.log %10 : vector<8x1xf32>
    %cst_5 = arith.constant 0.000000e+00 : f32
    %12 = vector.broadcast %cst_5 : f32 to vector<8x32xf32>
    %13 = arith.cmpf ogt, %3, %12 : vector<8x32xf32>
    %cst_6 = arith.constant 0.000000e+00 : f32
    %14 = vector.broadcast %cst_6 : f32 to vector<8x32xf32>
    %15 = arith.select %13, %3, %14 : vector<8x32xi1>, vector<8x32xf32>
    %cst_7 = arith.constant 0.000000e+00 : f32
    %16 = vector.broadcast %cst_7 : f32 to vector<8x32xf32>
    %17 = arith.cmpf ogt, %3, %16 : vector<8x32xf32>
    %cst_8 = arith.constant 0.000000e+00 : f32
    %18 = vector.broadcast %cst_8 : f32 to vector<8x32xf32>
    %19 = arith.cmpf ogt, %3, %18 : vector<8x32xf32>
    %cst_9 = arith.constant 1.000000e+00 : f32
    %20 = vector.broadcast %cst_9 : f32 to vector<8x32xf32>
    %21 = arith.select %19, %3, %20 : vector<8x32xi1>, vector<8x32xf32>
    %22 = math.log %21 : vector<8x32xf32>
    %23 = arith.mulf %3, %22 : vector<8x32xf32>
    %cst_10 = arith.constant 0.000000e+00 : f32
    %24 = vector.broadcast %cst_10 : f32 to vector<8x32xf32>
    %25 = arith.select %17, %23, %24 : vector<8x32xi1>, vector<8x32xf32>
    %cst_11 = arith.constant dense<0.000000e+00> : vector<8xf32>
    %26 = vector.multi_reduction <add>, %25, %cst_11 [1] : vector<8x32xf32> to vector<8xf32>
    %27 = vector.shape_cast %26 : vector<8xf32> to vector<8x1xf32>
    %28 = arith.mulf %15, %7 : vector<8x32xf32>
    %cst_12 = arith.constant dense<0.000000e+00> : vector<8xf32>
    %29 = vector.multi_reduction <add>, %28, %cst_12 [1] : vector<8x32xf32> to vector<8xf32>
    %30 = vector.shape_cast %29 : vector<8xf32> to vector<8x1xf32>
    %31 = arith.subf %27, %30 : vector<8x1xf32>
    %cst_13 = arith.constant dense<0.000000e+00> : vector<8xf32>
    %32 = vector.multi_reduction <add>, %15, %cst_13 [1] : vector<8x32xf32> to vector<8xf32>
    %33 = vector.shape_cast %32 : vector<8xf32> to vector<8x1xf32>
    %34 = arith.mulf %11, %33 : vector<8x1xf32>
    %35 = arith.addf %31, %34 : vector<8x1xf32>
    %c0_14 = arith.constant 0 : index
    %c0_15 = arith.constant 0 : index
    %36 = vector.load %arg3[%c0_14, %c0_15] : memref<8x1xf32, #tpu.memory_space<vmem>>, vector<8x1xf32>
    tpu.vector_store %arg3[%c0_14, %c0_15], %35 {strides = array<i32>} : memref<8x1xf32, #tpu.memory_space<vmem>>, vector<8x1xf32>,
    return
  }
  func.func @transform_0(%arg0: i32) -> (i32, i32) {
    %c0_i32 = arith.constant 0 : i32
    %c0_i32_0 = arith.constant 0 : i32
    return %arg0, %c0_i32 : i32, i32
  }
  func.func @transform_1(%arg0: i32) -> (i32, i32) {
    %c0_i32 = arith.constant 0 : i32
    %c0_i32_0 = arith.constant 0 : i32
    return %arg0, %c0_i32 : i32, i32
  }
  func.func @transform_2(%arg0: i32) -> (i32, i32) {
    %c0_i32 = arith.constant 0 : i32
    %c0_i32_0 = arith.constant 0 : i32
    return %arg0, %c0_i32 : i32, i32
  }
}

</mosaic_0001>

<llo_original>
// kernel: tpu_custom_call.1
$region0: #{tpu_custom_call.1}
  #allocation0 [shape = 'u32[]', space=smem, size = 0x4, offset = 0x4, fixed_abs, tag = 'smem constant byte address 0x4 - core index']
  #allocation1 [shape = 'u32[144,128]{1,0:T(1,128)}', space=vmem, size = 0x12000, scoped, tag = 'internal scratch']
  %s0 = inlined_call_operand.hbm [shape: f32[8,32], index: 0, kind: input, shape index: {}]
  %s1 = inlined_call_operand.hbm [shape: f32[8,32], index: 1, kind: input, shape index: {}]
  %s2 = inlined_call_operand.vmem [shape: f32[8,1], index: 2, kind: output, shape index: {}]
  %s3 = sld [smem:[#allocation0]]
  $region26: #{tpu_custom_call.1} parent=0
    _
  %s5 = ssub.s32 1, %s3
  %s6 = scalar_select 0, %s5, %s3
  $region1: #{tpu_custom_call.1} parent=0
    #allocation2 [shape = 'u8[4096]{0}', space=vmem, size = 0x1000, scoped, tag = 'input window, operand 0, single buffered']
    #allocation3 [shape = 's32[1]{0}', space=sflag, size = 0x4, scoped, tag = 'scoped memory for tpu_custom_call.1']
    #allocation4 [shape = 'u8[4096]{0}', space=vmem, size = 0x1000, scoped, tag = 'input window, operand 1, single buffered']
    #allocation5 [shape = 's32[1]{0}', space=sflag, size = 0x4, scoped, tag = 'scoped memory for tpu_custom_call.1']
    %7 = vsyncpa [#allocation3], 0
    %8 = vsyncpa [#allocation5], 0
    // Predicated region
    $region2: #{tpu_custom_call.1} parent=1 // pred_check
      _
    $region3: #{tpu_custom_call.1} parent=1 // pred_check_branch
      %10 = sbr.rel (0) target = $region5
    $region4: #{tpu_custom_call.1} parent=1 // pred_region
      %s12 = ssub.s32 128, 128
      %13 = vsyncadd [#allocation3], %s12
      %s15 = sshll.u32 [#allocation2], 4
      %s16 = int_to_ptr.vmem [resolvable:$true] %s15
      %18 = dma.hbm_to_vmem [thread:$0]  %s0, 128, %s16, [#allocation3]
    $region5: #{tpu_custom_call.1} parent=1 // pred_fallthru
      _
    // Predicated region
    $region6: #{tpu_custom_call.1} parent=1 // pred_check
      _
    $region7: #{tpu_custom_call.1} parent=1 // pred_check_branch
      %20 = sbr.rel (0) target = $region9
    $region8: #{tpu_custom_call.1} parent=1 // pred_region
      %s22 = ssub.s32 128, 128
      %23 = vsyncadd [#allocation5], %s22
      %s25 = sshll.u32 [#allocation4], 4
      %s26 = int_to_ptr.vmem [resolvable:$true] %s25
      %28 = dma.hbm_to_vmem [thread:$0]  %s1, 128, %s26, [#allocation5]
    $region9: #{tpu_custom_call.1} parent=1 // pred_fallthru
      _
    // Predicated region
    $region10: #{tpu_custom_call.1} parent=1 // pred_check
      _
    $region11: #{tpu_custom_call.1} parent=1 // pred_check_branch
      %30 = sbr.rel (0) target = $region13
    $region12: #{tpu_custom_call.1} parent=1 // pred_region
      %31 = dma.done [#allocation3], 128
    $region13: #{tpu_custom_call.1} parent=1 // pred_fallthru
      _
    // Predicated region
    $region14: #{tpu_custom_call.1} parent=1 // pred_check
      _
    $region15: #{tpu_custom_call.1} parent=1 // pred_check_branch
      %33 = sbr.rel (0) target = $region17
    $region16: #{tpu_custom_call.1} parent=1 // pred_region
      %34 = dma.done [#allocation5], 128
    $region17: #{tpu_custom_call.1} parent=1 // pred_fallthru
      _
    %v35 = vld [vmem:[#allocation2] sm:$0xff]
    %v36 = vmul.f32 %v35, 0.25
    %v37 = vld [vmem:[#allocation4] sm:$0xff]
    %vm38 = vcmask 261120
    %v39 = vsel %vm38, %v36, -inf
    %40 = vmax.xlane.f32.xlu0 %v39
    %v41 = vpop.xlane.xlu0 %40
    %v42 = vsub.f32 %v36, %v41
    %v43 = vmul.f32 %v42, 1.442695
    %v44 = vpow.pop %v43
    %v45 = vsel %vm38, %v44, 0.0
    %46 = vadd.xlane.f32.xlu0 %v45
    %v47 = vpop.xlane.xlu0 %46
    %v48 = vlog2.pop %v47
    %v49 = vmul.f32 %v48, 0.6931472
    %vm50 = vcmp.gt.f32.partialorder %v37, 0.0
    %v51 = vsel %vm50, %v37, 0.0
    %v52 = vsel %vm50, %v37, 1.0
    %v53 = vlog2.pop %v52
    %v54 = vmul.f32 %v53, 0.6931472
    %v55 = vmul.f32 %v37, %v54
    %v56 = vsel %vm50, %v55, 0.0
    %v57 = vsel %vm38, %v56, 0.0
    %58 = vadd.xlane.f32.xlu0 %v57
    %v59 = vpop.xlane.xlu0 %58
    %v60 = vmul.f32 %v51, %v42
    %v61 = vsel %vm38, %v60, 0.0
    %62 = vadd.xlane.f32.xlu0 %v61
    %v63 = vpop.xlane.xlu0 %62
    %v64 = vsub.f32 %v59, %v63
    %v65 = vsel %vm38, %v51, 0.0
    %66 = vadd.xlane.f32.xlu0 %v65
    %v67 = vpop.xlane.xlu0 %66
    %v68 = vmul.f32 %v49, %v67
    %v69 = vadd.f32 %v64, %v68
    %vm70 = vcmask 7168
    %71 = vst.msk [vmem:[%s2] sm:$0xff] %vm70, %v69
    // Predicated region
    $region18: #{tpu_custom_call.1} parent=1 // pred_check
      _
    $region19: #{tpu_custom_call.1} parent=1 // pred_check_branch
      %73 = sbr.rel (0) target = $region21
    $region20: #{tpu_custom_call.1} parent=1 // pred_region
      _
    $region21: #{tpu_custom_call.1} parent=1 // pred_fallthru
      _
    // Predicated region
    $region22: #{tpu_custom_call.1} parent=1 // pred_check
      _
    $region23: #{tpu_custom_call.1} parent=1 // pred_check_branch
      %75 = sbr.rel (0) target = $region25
    $region24: #{tpu_custom_call.1} parent=1 // pred_region
      _
    $region25: #{tpu_custom_call.1} parent=1 // pred_fallthru
      _
    %76 = vsyncpa [#allocation3], 1
    %77 = vsyncpa [#allocation5], 1

</llo_original>
